<compile_context>
chip_gen: v6e
topology: v6e:2x2x1
jax: 0.10.0
libtpu: 0.0.40
codegen_flags: <defaults>
</compile_context>

<pallas_src>
import math
import functools

import jax
import jax.numpy as jnp
from jax.experimental import pallas as pl
from jax.experimental.pallas import tpu as pltpu

LOG_STD_MAX = 2.0
LOG_STD_MIN = -20.0
LANE = 128


def _round_up(x, m):
    return ((x + m - 1) // m) * m


def _softplus(z):
    # numerically stable softplus(z) = max(z, 0) + log1p(exp(-|z|))
    return jnp.maximum(z, 0.0) + jnp.log1p(jnp.exp(-jnp.abs(z)))


# ----------------------------------------------------------------------------
# Kernel
# ----------------------------------------------------------------------------
def actor_kernel(*refs, act_dim, act_limit, deterministic, with_logprob):
    if deterministic:
        (obs_ref, w1_ref, b1_ref, w2_ref, b2_ref, wh_ref, bh_ref, out_ref) = refs
        eps_ref = None
    else:
        (obs_ref, w1_ref, b1_ref, w2_ref, b2_ref, wh_ref, bh_ref,
         eps_ref, out_ref) = refs

    out_pad = out_ref.shape[-1]  # lane-padded action width (multiple of 128)

    # ---- MLP trunk: Linear + ReLU, Linear + ReLU (f32 accumulation) ----------
    x = obs_ref[...]
    h = jnp.dot(x, w1_ref[...], preferred_element_type=jnp.float32) + b1_ref[...]
    h = jnp.maximum(h, 0.0)
    h = jnp.dot(h.astype(w2_ref.dtype), w2_ref[...],
                preferred_element_type=jnp.float32) + b2_ref[...]
    h = jnp.maximum(h, 0.0)

    # ---- fused mu / log_std head: one matmul, halves are 128-lane aligned ----
    head = jnp.dot(h.astype(wh_ref.dtype), wh_ref[...],
                   preferred_element_type=jnp.float32) + bh_ref[...]
    mu = head[:, :out_pad]                       # padded lanes are exactly 0
    log_std = jnp.clip(head[:, out_pad:], LOG_STD_MIN, LOG_STD_MAX)
    std = jnp.exp(log_std)                       # padded lanes -> exp(0) = 1

    # ---- reparameterized sample -----------------------------------------------
    if deterministic:
        pi_action = mu
    else:
        pi_action = mu + std * eps_ref[...]      # eps padded lanes are 0

    # Padded lanes of pi_action are exactly 0 -> tanh(0) = 0, no mask needed.
    out = act_limit * jnp.tanh(pi_action)

    if with_logprob:
        lane = jax.lax.broadcasted_iota(jnp.int32, out.shape, 1)
        act_mask = lane < act_dim
        # Normal(mu, std).log_prob(pi_action): z = (a - mu)/std == eps exactly
        # (== 0 on the deterministic path) -> no divide needed.
        if deterministic:
            log_prob = -log_std - 0.5 * math.log(2.0 * math.pi)
        else:
            e = eps_ref[...]
            log_prob = -0.5 * e * e - log_std - 0.5 * math.log(2.0 * math.pi)
        # tanh-squash correction: 2*(log2 - a - softplus(-2a))
        corr = 2.0 * (math.log(2.0) - pi_action - _softplus(-2.0 * pi_action))
        per_lane = jnp.where(act_mask, log_prob - corr, 0.0)
        logp = jnp.sum(per_lane, axis=-1, keepdims=True)
        # Pack logp into lane `act_dim` of the lane-dense output slab.
        out = out + logp * (lane == act_dim).astype(out.dtype)

    out_ref[...] = out


# ----------------------------------------------------------------------------
# Parameter packing (done once): pad + fuse weights to lane-aligned shapes.
# Weights are stored as (in_features, out_features) so y = x @ W + b.
# ----------------------------------------------------------------------------
def pack_params(p, *, mxu_dtype=jnp.float32):
    obs_dim, h1 = p["w1"].shape
    h2 = p["w2"].shape[1]
    act_dim = p["wmu"].shape[1]

    obs_pad = _round_up(obs_dim, LANE)
    h1_pad = _round_up(h1, LANE)
    h2_pad = _round_up(h2, LANE)
    out_pad = _round_up(act_dim + 1, LANE)   # act lanes + 1 lane for logp

    def pad2(a, r, c):
        return jnp.pad(a, ((0, r - a.shape[0]), (0, c - a.shape[1])))

    w1 = pad2(p["w1"], obs_pad, h1_pad)
    b1 = pad2(p["b1"], 1, h1_pad)
    w2 = pad2(p["w2"], h1_pad, h2_pad)
    b2 = pad2(p["b2"], 1, h2_pad)

    # Fused head weight: columns [0:out_pad) -> mu, [out_pad:2*out_pad) -> log_std.
    wh = jnp.zeros((h2_pad, 2 * out_pad), jnp.float32)
    wh = wh.at[:h2, :act_dim].set(p["wmu"])
    wh = wh.at[:h2, out_pad:out_pad + act_dim].set(p["wls"])
    bh = jnp.zeros((1, 2 * out_pad), jnp.float32)
    bh = bh.at[:, :act_dim].set(p["bmu"])
    bh = bh.at[:, out_pad:out_pad + act_dim].set(p["bls"])

    return dict(
        w1=w1.astype(mxu_dtype), b1=b1,
        w2=w2.astype(mxu_dtype), b2=b2,
        wh=wh.astype(mxu_dtype), bh=bh,
        obs_dim=obs_dim, act_dim=act_dim,
        obs_pad=obs_pad, out_pad=out_pad,
        mxu_dtype=mxu_dtype,
    )


# ----------------------------------------------------------------------------
# Wrapper
# ----------------------------------------------------------------------------
def squashed_gaussian_actor(obs, packed, eps=None, *, act_limit,
                            deterministic=False, with_logprob=True,
                            tile_b=512):
    B = obs.shape[0]
    act_dim = packed["act_dim"]
    obs_pad = packed["obs_pad"]
    out_pad = packed["out_pad"]
    mxu_dtype = packed["mxu_dtype"]

    tb = min(tile_b, B)
    B_pad = _round_up(B, tb)
    nb = B_pad // tb

    obs_p = jnp.pad(obs, ((0, B_pad - B), (0, obs_pad - obs.shape[1])))
    obs_p = obs_p.astype(mxu_dtype)

    weights = (packed["w1"], packed["b1"], packed["w2"], packed["b2"],
               packed["wh"], packed["bh"])

    args = [obs_p, *weights]
    in_specs = [pl.BlockSpec((tb, obs_pad), lambda i: (i, 0))]
    # Weights/biases stay VMEM-resident across batch tiles (same block every step).
    in_specs += [pl.BlockSpec(a.shape, lambda i: (0, 0)) for a in weights]

    if not deterministic:
        if eps is None:
            raise ValueError("eps is required when deterministic=False")
        eps_p = jnp.pad(eps.astype(jnp.float32),
                        ((0, B_pad - B), (0, out_pad - eps.shape[1])))
        args.append(eps_p)
        in_specs.append(pl.BlockSpec((tb, out_pad), lambda i: (i, 0)))

    kernel = functools.partial(
        actor_kernel,
        act_dim=act_dim,
        act_limit=float(act_limit),
        deterministic=bool(deterministic),
        with_logprob=bool(with_logprob),
    )

    out = pl.pallas_call(
        kernel,
        out_shape=jax.ShapeDtypeStruct((B_pad, out_pad), jnp.float32),
        grid_spec=pltpu.PrefetchScalarGridSpec(
            num_scalar_prefetch=0,
            grid=(nb,),
            in_specs=in_specs,
            out_specs=pl.BlockSpec((tb, out_pad), lambda i: (i, 0)),
        ),
        compiler_params=pltpu.CompilerParams(
            dimension_semantics=("parallel",),       # shards batch tiles on v7x's 2 TCs
            vmem_limit_bytes=32 * 1024 * 1024,       # headroom under v7x's 64 MiB VMEM
        ),
    )(*args)

    pi = out[:B, :act_dim]
    logp = out[:B, act_dim] if with_logprob else None
    return pi, logp


# ----------------------------------------------------------------------------
# Synthetic params + pure-JAX reference
# ----------------------------------------------------------------------------
def init_params(key, obs_dim, hidden_sizes, act_dim):
    """Deterministic synthetic parameter init (weights stored as (in, out))."""
    sizes = [obs_dim] + list(hidden_sizes)
    keys = jax.random.split(key, 8)
    p = {}
    p["w1"] = 0.1 * jax.random.normal(keys[0], (sizes[0], sizes[1]), jnp.float32)
    p["b1"] = 0.1 * jax.random.normal(keys[1], (1, sizes[1]), jnp.float32)
    p["w2"] = 0.1 * jax.random.normal(keys[2], (sizes[1], sizes[2]), jnp.float32)
    p["b2"] = 0.1 * jax.random.normal(keys[3], (1, sizes[2]), jnp.float32)
    p["wmu"] = 0.1 * jax.random.normal(keys[4], (sizes[2], act_dim), jnp.float32)
    p["bmu"] = 0.1 * jax.random.normal(keys[5], (1, act_dim), jnp.float32)
    p["wls"] = 0.1 * jax.random.normal(keys[6], (sizes[2], act_dim), jnp.float32)
    p["bls"] = 0.1 * jax.random.normal(keys[7], (1, act_dim), jnp.float32)
    return p


def reference(obs, p, eps, act_limit):
    h = jnp.maximum(obs @ p["w1"] + p["b1"], 0.0)
    h = jnp.maximum(h @ p["w2"] + p["b2"], 0.0)
    mu = h @ p["wmu"] + p["bmu"]
    log_std = jnp.clip(h @ p["wls"] + p["bls"], LOG_STD_MIN, LOG_STD_MAX)
    std = jnp.exp(log_std)
    a = mu + std * eps
    logp = jnp.sum(-0.5 * ((a - mu) / std) ** 2 - log_std
                   - 0.5 * math.log(2 * math.pi), axis=-1)
    logp = logp - jnp.sum(2.0 * (math.log(2.0) - a - jax.nn.softplus(-2.0 * a)),
                          axis=-1)
    return act_limit * jnp.tanh(a), logp


if __name__ == "__main__":
    B, obs_dim, act_dim = 4, 16, 4
    hidden_sizes = (32, 32)
    act_limit = 2.0

    key = jax.random.PRNGKey(0)
    k_obs, k_eps, k_par = jax.random.split(key, 3)
    obs = jax.random.normal(k_obs, (B, obs_dim), jnp.float32)
    eps = jax.random.normal(k_eps, (B, act_dim), jnp.float32)
    params = init_params(k_par, obs_dim, hidden_sizes, act_dim)

    pi_ref, logp_ref = reference(obs, params, eps, act_limit)

    # --- f32 MXU operands: stochastic + logprob path (exact check) ------------
    packed_f32 = pack_params(params, mxu_dtype=jnp.float32)
    pi, logp = squashed_gaussian_actor(obs, packed_f32, eps, act_limit=act_limit,
                                       deterministic=False, with_logprob=True)
    pi = jax.block_until_ready(pi)
    logp = jax.block_until_ready(logp)
    assert jnp.allclose(pi, pi_ref, atol=1e-5), "pi mismatch"
    assert jnp.allclose(logp, logp_ref, atol=1e-4), "logp mismatch"

    # --- deterministic / no-logprob path (no eps DMA, no logp math) ----------
    pi_det, logp_det = squashed_gaussian_actor(obs, packed_f32, None,
                                               act_limit=act_limit,
                                               deterministic=True,
                                               with_logprob=False)
    pi_det = jax.block_until_ready(pi_det)
    h = jnp.maximum(obs @ params["w1"] + params["b1"], 0.0)
    h = jnp.maximum(h @ params["w2"] + params["b2"], 0.0)
    mu_ref = h @ params["wmu"] + params["bmu"]
    assert logp_det is None
    assert jnp.allclose(pi_det, act_limit * jnp.tanh(mu_ref), atol=1e-5), \
        "deterministic pi mismatch"

    # --- bf16 MXU operands, f32 epilogue (fast config on v5e/v6e/v7x) --------
    packed_bf16 = pack_params(params, mxu_dtype=jnp.bfloat16)
    pi_b, logp_b = squashed_gaussian_actor(obs, packed_bf16, eps,
                                           act_limit=act_limit,
                                           deterministic=False,
                                           with_logprob=True)
    pi_b = jax.block_until_ready(pi_b)
    logp_b = jax.block_until_ready(logp_b)
    assert jnp.allclose(pi_b, pi_ref, atol=5e-2), "bf16 pi mismatch"
    assert jnp.allclose(logp_b, logp_ref, atol=5e-1), "bf16 logp mismatch"

    print("KERNEL_OK")
</pallas_src>

<mosaic_0001>
module attributes {stable_mosaic.version = 11 : i64} {
  func.func @actor_kernel(%arg0: i32, %arg1: memref<4x128xf32, #tpu.memory_space<vmem>>, %arg2: memref<128x128xf32, #tpu.memory_space<vmem>>, %arg3: memref<1x128xf32, #tpu.memory_space<vmem>>, %arg4: memref<128x128xf32, #tpu.memory_space<vmem>>, %arg5: memref<1x128xf32, #tpu.memory_space<vmem>>, %arg6: memref<128x256xf32, #tpu.memory_space<vmem>>, %arg7: memref<1x256xf32, #tpu.memory_space<vmem>>, %arg8: memref<4x128xf32, #tpu.memory_space<vmem>>, %arg9: memref<4x128xf32, #tpu.memory_space<vmem>>) attributes {dimension_semantics = [#tpu.dimension_semantics<parallel>], iteration_bounds = array<i64: 1>, scalar_prefetch = 0 : i64, scratch_operands = 0 : i64, tpu.core_type = #tpu.core_type<tc>, window_params = [{transform_indices = @transform_0, window_bounds = array<i64: 4, 128>}, {pipeline_mode = #tpu.pipeline_mode<synchronous>, transform_indices = @transform_1, window_bounds = array<i64: 128, 128>}, {pipeline_mode = #tpu.pipeline_mode<synchronous>, transform_indices = @transform_2, window_bounds = array<i64: 1, 128>}, {pipeline_mode = #tpu.pipeline_mode<synchronous>, transform_indices = @transform_3, window_bounds = array<i64: 128, 128>}, {pipeline_mode = #tpu.pipeline_mode<synchronous>, transform_indices = @transform_4, window_bounds = array<i64: 1, 128>}, {pipeline_mode = #tpu.pipeline_mode<synchronous>, transform_indices = @transform_5, window_bounds = array<i64: 128, 256>}, {pipeline_mode = #tpu.pipeline_mode<synchronous>, transform_indices = @transform_6, window_bounds = array<i64: 1, 256>}, {transform_indices = @transform_7, window_bounds = array<i64: 4, 128>}, {transform_indices = @transform_8, window_bounds = array<i64: 4, 128>}]} {
    %c0 = arith.constant 0 : index
    %c0_0 = arith.constant 0 : index
    %0 = vector.load %arg1[%c0, %c0_0] : memref<4x128xf32, #tpu.memory_space<vmem>>, vector<4x128xf32>
    %c0_1 = arith.constant 0 : index
    %c0_2 = arith.constant 0 : index
    %1 = vector.load %arg2[%c0_1, %c0_2] : memref<128x128xf32, #tpu.memory_space<vmem>>, vector<128x128xf32>
    %cst = arith.constant dense<0.000000e+00> : vector<4x128xf32>
    %2 = tpu.matmul %0, %1, %cst {dimension_numbers = #tpu.dot_dimension_numbers<[1], [0], [0], [1], [0, 0, 1, 1], [], []>} : vector<4x128xf32>, vector<128x128xf32>, vector<4x128xf32> -> vector<4x128xf32>
    %c0_3 = arith.constant 0 : index
    %c0_4 = arith.constant 0 : index
    %3 = vector.load %arg3[%c0_3, %c0_4] : memref<1x128xf32, #tpu.memory_space<vmem>>, vector<1x128xf32>
    %4 = vector.broadcast %3 : vector<1x128xf32> to vector<4x128xf32>
    %5 = arith.addf %2, %4 : vector<4x128xf32>
    %cst_5 = arith.constant 0.000000e+00 : f32
    %6 = vector.broadcast %cst_5 : f32 to vector<4x128xf32>
    %7 = arith.maximumf %5, %6 : vector<4x128xf32>
    %c0_6 = arith.constant 0 : index
    %c0_7 = arith.constant 0 : index
    %8 = vector.load %arg4[%c0_6, %c0_7] : memref<128x128xf32, #tpu.memory_space<vmem>>, vector<128x128xf32>
    %cst_8 = arith.constant dense<0.000000e+00> : vector<4x128xf32>
    %9 = tpu.matmul %7, %8, %cst_8 {dimension_numbers = #tpu.dot_dimension_numbers<[1], [0], [0], [1], [0, 0, 1, 1], [], []>} : vector<4x128xf32>, vector<128x128xf32>, vector<4x128xf32> -> vector<4x128xf32>
    %c0_9 = arith.constant 0 : index
    %c0_10 = arith.constant 0 : index
    %10 = vector.load %arg5[%c0_9, %c0_10] : memref<1x128xf32, #tpu.memory_space<vmem>>, vector<1x128xf32>
    %11 = vector.broadcast %10 : vector<1x128xf32> to vector<4x128xf32>
    %12 = arith.addf %9, %11 : vector<4x128xf32>
    %cst_11 = arith.constant 0.000000e+00 : f32
    %13 = vector.broadcast %cst_11 : f32 to vector<4x128xf32>
    %14 = arith.maximumf %12, %13 : vector<4x128xf32>
    %c0_12 = arith.constant 0 : index
    %c0_13 = arith.constant 0 : index
    %15 = vector.load %arg6[%c0_12, %c0_13] : memref<128x256xf32, #tpu.memory_space<vmem>>, vector<128x256xf32>
    %cst_14 = arith.constant dense<0.000000e+00> : vector<4x256xf32>
    %16 = tpu.matmul %14, %15, %cst_14 {dimension_numbers = #tpu.dot_dimension_numbers<[1], [0], [0], [1], [0, 0, 1, 1], [], []>} : vector<4x128xf32>, vector<128x256xf32>, vector<4x256xf32> -> vector<4x256xf32>
    %c0_15 = arith.constant 0 : index
    %c0_16 = arith.constant 0 : index
    %17 = vector.load %arg7[%c0_15, %c0_16] : memref<1x256xf32, #tpu.memory_space<vmem>>, vector<1x256xf32>
    %18 = vector.broadcast %17 : vector<1x256xf32> to vector<4x256xf32>
    %19 = arith.addf %16, %18 : vector<4x256xf32>
    %20 = vector.extract_strided_slice %19 {offsets = [0, 0], sizes = [4, 128], strides = [1, 1]} : vector<4x256xf32> to vector<4x128xf32>
    %21 = vector.extract_strided_slice %19 {offsets = [0, 128], sizes = [4, 128], strides = [1, 1]} : vector<4x256xf32> to vector<4x128xf32>
    %cst_17 = arith.constant -2.000000e+01 : f32
    %cst_18 = arith.constant 2.000000e+00 : f32
    %22 = vector.broadcast %cst_17 : f32 to vector<4x128xf32>
    %23 = arith.maximumf %22, %21 : vector<4x128xf32>
    %24 = vector.broadcast %cst_18 : f32 to vector<4x128xf32>
    %25 = arith.minimumf %24, %23 : vector<4x128xf32>
    %26 = math.exp %25 : vector<4x128xf32>
    %c0_19 = arith.constant 0 : index
    %c0_20 = arith.constant 0 : index
    %27 = vector.load %arg8[%c0_19, %c0_20] : memref<4x128xf32, #tpu.memory_space<vmem>>, vector<4x128xf32>
    %28 = arith.mulf %26, %27 : vector<4x128xf32>
    %29 = arith.addf %20, %28 : vector<4x128xf32>
    %30 = math.tanh %29 : vector<4x128xf32>
    %cst_21 = arith.constant 2.000000e+00 : f32
    %31 = vector.broadcast %cst_21 : f32 to vector<4x128xf32>
    %32 = arith.mulf %31, %30 : vector<4x128xf32>
    %33 = tpu.iota {dimensions = array<i32: 1>} : vector<4x128xi32>
    %c4_i32 = arith.constant 4 : i32
    %34 = vector.broadcast %c4_i32 : i32 to vector<4x128xi32>
    %35 = arith.cmpi slt, %33, %34 : vector<4x128xi32>
    %c0_22 = arith.constant 0 : index
    %c0_23 = arith.constant 0 : index
    %36 = vector.load %arg8[%c0_22, %c0_23] : memref<4x128xf32, #tpu.memory_space<vmem>>, vector<4x128xf32>
    %cst_24 = arith.constant -5.000000e-01 : f32
    %37 = vector.broadcast %cst_24 : f32 to vector<4x128xf32>
    %38 = arith.mulf %37, %36 : vector<4x128xf32>
    %39 = arith.mulf %38, %36 : vector<4x128xf32>
    %40 = arith.subf %39, %25 : vector<4x128xf32>
    %cst_25 = arith.constant 0.918938517 : f32
    %41 = vector.broadcast %cst_25 : f32 to vector<4x128xf32>
    %42 = arith.subf %40, %41 : vector<4x128xf32>
    %cst_26 = arith.constant 0.693147182 : f32
    %43 = vector.broadcast %cst_26 : f32 to vector<4x128xf32>
    %44 = arith.subf %43, %29 : vector<4x128xf32>
    %cst_27 = arith.constant -2.000000e+00 : f32
    %45 = vector.broadcast %cst_27 : f32 to vector<4x128xf32>
    %46 = arith.mulf %45, %29 : vector<4x128xf32>
    %cst_28 = arith.constant 0.000000e+00 : f32
    %47 = vector.broadcast %cst_28 : f32 to vector<4x128xf32>
    %48 = arith.maximumf %46, %47 : vector<4x128xf32>
    %49 = math.absf %46 : vector<4x128xf32>
    %cst_29 = arith.constant 0.000000e+00 : f32
    %50 = vector.broadcast %cst_29 : f32 to vector<4x128xf32>
    %51 = arith.subf %50, %49 : vector<4x128xf32>
    %52 = math.exp %51 : vector<4x128xf32>
    %53 = math.log1p %52 : vector<4x128xf32>
    %54 = arith.addf %48, %53 : vector<4x128xf32>
    %55 = arith.subf %44, %54 : vector<4x128xf32>
    %cst_30 = arith.constant 2.000000e+00 : f32
    %56 = vector.broadcast %cst_30 : f32 to vector<4x128xf32>
    %57 = arith.mulf %56, %55 : vector<4x128xf32>
    %58 = arith.subf %42, %57 : vector<4x128xf32>
    %cst_31 = arith.constant 0.000000e+00 : f32
    %59 = vector.broadcast %cst_31 : f32 to vector<4x128xf32>
    %60 = arith.select %35, %58, %59 : vector<4x128xi1>, vector<4x128xf32>
    %cst_32 = arith.constant dense<0.000000e+00> : vector<4xf32>
    %61 = vector.multi_reduction <add>, %60, %cst_32 [1] : vector<4x128xf32> to vector<4xf32>
    %62 = vector.shape_cast %61 : vector<4xf32> to vector<4x1xf32>
    %c4_i32_33 = arith.constant 4 : i32
    %63 = vector.broadcast %c4_i32_33 : i32 to vector<4x128xi32>
    %64 = arith.cmpi eq, %33, %63 : vector<4x128xi32>
    %65 = arith.extui %64 : vector<4x128xi1> to vector<4x128xi32>
    %66 = arith.sitofp %65 : vector<4x128xi32> to vector<4x128xf32>
    %67 = vector.broadcast %62 : vector<4x1xf32> to vector<4x128xf32>
    %68 = arith.mulf %67, %66 : vector<4x128xf32>
    %69 = arith.addf %32, %68 : vector<4x128xf32>
    %c0_34 = arith.constant 0 : index
    %c0_35 = arith.constant 0 : index
    %70 = vector.load %arg9[%c0_34, %c0_35] : memref<4x128xf32, #tpu.memory_space<vmem>>, vector<4x128xf32>
    tpu.vector_store %arg9[%c0_34, %c0_35], %69 {strides = array<i32>} : memref<4x128xf32, #tpu.memory_space<vmem>>, vector<4x128xf32>,
    return
  }
  func.func @transform_0(%arg0: i32) -> (i32, i32) {
    %c0_i32 = arith.constant 0 : i32
    %c0_i32_0 = arith.constant 0 : i32
    return %arg0, %c0_i32 : i32, i32
  }
  func.func @transform_1(%arg0: i32) -> (i32, i32) {
    %c0_i32 = arith.constant 0 : i32
    %c0_i32_0 = arith.constant 0 : i32
    %c0_i32_1 = arith.constant 0 : i32
    return %c0_i32, %c0_i32_0 : i32, i32
  }
  func.func @transform_2(%arg0: i32) -> (i32, i32) {
    %c0_i32 = arith.constant 0 : i32
    %c0_i32_0 = arith.constant 0 : i32
    %c0_i32_1 = arith.constant 0 : i32
    return %c0_i32, %c0_i32_0 : i32, i32
  }
  func.func @transform_3(%arg0: i32) -> (i32, i32) {
    %c0_i32 = arith.constant 0 : i32
    %c0_i32_0 = arith.constant 0 : i32
    %c0_i32_1 = arith.constant 0 : i32
    return %c0_i32, %c0_i32_0 : i32, i32
  }
  func.func @transform_4(%arg0: i32) -> (i32, i32) {
    %c0_i32 = arith.constant 0 : i32
    %c0_i32_0 = arith.constant 0 : i32
    %c0_i32_1 = arith.constant 0 : i32
    return %c0_i32, %c0_i32_0 : i32, i32
  }
  func.func @transform_5(%arg0: i32) -> (i32, i32) {
    %c0_i32 = arith.constant 0 : i32
    %c0_i32_0 = arith.constant 0 : i32
    %c0_i32_1 = arith.constant 0 : i32
    return %c0_i32, %c0_i32_0 : i32, i32
  }
  func.func @transform_6(%arg0: i32) -> (i32, i32) {
    %c0_i32 = arith.constant 0 : i32
    %c0_i32_0 = arith.constant 0 : i32
    %c0_i32_1 = arith.constant 0 : i32
    return %c0_i32, %c0_i32_0 : i32, i32
  }
  func.func @transform_7(%arg0: i32) -> (i32, i32) {
    %c0_i32 = arith.constant 0 : i32
    %c0_i32_0 = arith.constant 0 : i32
    return %arg0, %c0_i32 : i32, i32
  }
  func.func @transform_8(%arg0: i32) -> (i32, i32) {
    %c0_i32 = arith.constant 0 : i32
    %c0_i32_0 = arith.constant 0 : i32
    return %arg0, %c0_i32 : i32, i32
  }
}

</mosaic_0001>

<llo_original>
// kernel: tpu_custom_call.1
$region0: #{tpu_custom_call.1}
  #allocation0 [shape = 'u32[]', space=smem, size = 0x4, offset = 0x4, fixed_abs, tag = 'smem constant byte address 0x4 - core index']
  #allocation1 [shape = 'u32[144,128]{1,0:T(1,128)}', space=vmem, size = 0x12000, scoped, tag = 'internal scratch']
  %s0 = inlined_call_operand.hbm [shape: f32[4,128], index: 0, kind: input, shape index: {}]
  %s1 = inlined_call_operand.hbm [shape: f32[128,128], index: 1, kind: input, shape index: {}]
  %s2 = inlined_call_operand.vmem [shape: f32[1,128], index: 2, kind: input, shape index: {}]
  %s3 = inlined_call_operand.hbm [shape: f32[128,128], index: 3, kind: input, shape index: {}]
  %s4 = inlined_call_operand.hbm [shape: f32[1,128], index: 4, kind: input, shape index: {}]
  %s5 = inlined_call_operand.hbm [shape: f32[128,256], index: 5, kind: input, shape index: {}]
  %s6 = inlined_call_operand.vmem [shape: f32[1,256], index: 6, kind: input, shape index: {}]
  %s7 = inlined_call_operand.vmem [shape: f32[4,128], index: 7, kind: input, shape index: {}]
  %s8 = inlined_call_operand.hbm [shape: f32[4,128], index: 8, kind: output, shape index: {}]
  %s9 = sld [smem:[#allocation0]]
  $region62: #{tpu_custom_call.1} parent=0
    _
  %s11 = ssub.s32 1, %s9
  %s12 = scalar_select 0, %s11, %s9
  $region1: #{tpu_custom_call.1} parent=0
    #allocation2 [shape = 'u8[2048]{0}', space=vmem, size = 0x800, scoped, tag = 'input window, operand 0, single buffered']
    #allocation3 [shape = 's32[1]{0}', space=sflag, size = 0x4, scoped, tag = 'scoped memory for tpu_custom_call.1']
    #allocation4 [shape = 's32[1]{0}', space=sflag, size = 0x4, scoped, tag = 'scoped memory for tpu_custom_call.1']
    #allocation5 [shape = 'u8[65536]{0}', space=vmem, size = 0x10000, scoped, tag = 'input window, operand 1, single buffered']
    #allocation6 [shape = 's32[1]{0}', space=sflag, size = 0x4, scoped, tag = 'scoped memory for tpu_custom_call.1']
    #allocation7 [shape = 'u8[65536]{0}', space=vmem, size = 0x10000, scoped, tag = 'input window, operand 3, single buffered']
    #allocation8 [shape = 'u8[512]{0}', space=vmem, size = 0x400, scoped, tag = 'input window, operand 4, single buffered']
    #allocation9 [shape = 's32[1]{0}', space=sflag, size = 0x4, scoped, tag = 'scoped memory for tpu_custom_call.1']
    #allocation10 [shape = 'u8[131072]{0}', space=vmem, size = 0x20000, scoped, tag = 'input window, operand 5, single buffered']
    #allocation11 [shape = 'u8[2048]{0}', space=vmem, size = 0x800, scoped, tag = 'output window, operand 0, single buffered']
    %13 = vsyncpa [#allocation3], 0
    %14 = vsyncpa [#allocation6], 0
    %15 = vsyncpa [#allocation9], 0
    %16 = vsyncpa [#allocation4], 0
    // Predicated region
    $region2: #{tpu_custom_call.1} parent=1 // pred_check
      _
    $region3: #{tpu_custom_call.1} parent=1 // pred_check_branch
      %18 = sbr.rel (0) target = $region5
    $region4: #{tpu_custom_call.1} parent=1 // pred_region
      %s20 = ssub.s32 64, 64
      %21 = vsyncadd [#allocation3], %s20
      %s23 = sshll.u32 [#allocation2], 4
      %s24 = int_to_ptr.vmem [resolvable:$true] %s23
      %26 = dma.hbm_to_vmem [thread:$0]  %s0, 64, %s24, [#allocation3]
    $region5: #{tpu_custom_call.1} parent=1 // pred_fallthru
      _
    // Predicated region
    $region6: #{tpu_custom_call.1} parent=1 // pred_check
      _
    $region7: #{tpu_custom_call.1} parent=1 // pred_check_branch
      %28 = sbr.rel (0) target = $region9
    $region8: #{tpu_custom_call.1} parent=1 // pred_region
      %s30 = ssub.s32 2048, 2048
      %31 = vsyncadd [#allocation6], %s30
      %s32 = sshll.u32 [#allocation5], 4
      %s33 = int_to_ptr.vmem [resolvable:$true] %s32
      %38 = dma.hbm_to_vmem [thread:$0]  %s1, 2048, %s33, [#allocation6], 128, 128, 8
    $region9: #{tpu_custom_call.1} parent=1 // pred_fallthru
      _
    // Predicated region
    $region10: #{tpu_custom_call.1} parent=1 // pred_check
      _
    $region11: #{tpu_custom_call.1} parent=1 // pred_check_branch
      %40 = sbr.rel (0) target = $region13
    $region12: #{tpu_custom_call.1} parent=1 // pred_region
      _
    $region13: #{tpu_custom_call.1} parent=1 // pred_fallthru
      _
    // Predicated region
    $region14: #{tpu_custom_call.1} parent=1 // pred_check
      _
    $region15: #{tpu_custom_call.1} parent=1 // pred_check_branch
      %42 = sbr.rel (0) target = $region17
    $region16: #{tpu_custom_call.1} parent=1 // pred_region
      %s44 = ssub.s32 2048, 2048
      %45 = vsyncadd [#allocation6], %s44
      %s46 = sshll.u32 [#allocation7], 4
      %s47 = int_to_ptr.vmem [resolvable:$true] %s46
      %52 = dma.hbm_to_vmem [thread:$0]  %s3, 2048, %s47, [#allocation6], 128, 128, 8
    $region17: #{tpu_custom_call.1} parent=1 // pred_fallthru
      _
    // Predicated region
    $region18: #{tpu_custom_call.1} parent=1 // pred_check
      _
    $region19: #{tpu_custom_call.1} parent=1 // pred_check_branch
      %54 = sbr.rel (0) target = $region21
    $region20: #{tpu_custom_call.1} parent=1 // pred_region
      %s56 = ssub.s32 16, 16
      %57 = vsyncadd [#allocation9], %s56
      %s59 = sshll.u32 [#allocation8], 4
      %s60 = int_to_ptr.vmem [resolvable:$true] %s59
      %62 = dma.hbm_to_vmem [thread:$0]  %s4, 16, %s60, [#allocation9]
    $region21: #{tpu_custom_call.1} parent=1 // pred_fallthru
      _
    // Predicated region
    $region22: #{tpu_custom_call.1} parent=1 // pred_check
      _
    $region23: #{tpu_custom_call.1} parent=1 // pred_check_branch
      %64 = sbr.rel (0) target = $region25
    $region24: #{tpu_custom_call.1} parent=1 // pred_region
      %s66 = ssub.s32 4096, 4096
      %67 = vsyncadd [#allocation9], %s66
      %s68 = sshll.u32 [#allocation10], 4
      %s69 = int_to_ptr.vmem [resolvable:$true] %s68
      %74 = dma.hbm_to_vmem [thread:$0]  %s5, 4096, %s69, [#allocation9], 256, 256, 16
    $region25: #{tpu_custom_call.1} parent=1 // pred_fallthru
      _
    // Predicated region
    $region26: #{tpu_custom_call.1} parent=1 // pred_check
      _
    $region27: #{tpu_custom_call.1} parent=1 // pred_check_branch
      %76 = sbr.rel (0) target = $region29
    $region28: #{tpu_custom_call.1} parent=1 // pred_region
      _
    $region29: #{tpu_custom_call.1} parent=1 // pred_fallthru
      _
    // Predicated region
    $region30: #{tpu_custom_call.1} parent=1 // pred_check
      _
    $region31: #{tpu_custom_call.1} parent=1 // pred_check_branch
      %78 = sbr.rel (0) target = $region33
    $region32: #{tpu_custom_call.1} parent=1 // pred_region
      _
    $region33: #{tpu_custom_call.1} parent=1 // pred_fallthru
      _
    // Predicated region
    $region34: #{tpu_custom_call.1} parent=1 // pred_check
      _
    $region35: #{tpu_custom_call.1} parent=1 // pred_check_branch
      %80 = sbr.rel (0) target = $region37
    $region36: #{tpu_custom_call.1} parent=1 // pred_region
      %81 = dma.done [#allocation3], 64
    $region37: #{tpu_custom_call.1} parent=1 // pred_fallthru
      _
    // Predicated region
    $region38: #{tpu_custom_call.1} parent=1 // pred_check
      _
    $region39: #{tpu_custom_call.1} parent=1 // pred_check_branch
      %83 = sbr.rel (0) target = $region41
    $region40: #{tpu_custom_call.1} parent=1 // pred_region
      %84 = dma.done [#allocation6], 2048
    $region41: #{tpu_custom_call.1} parent=1 // pred_fallthru
      _
    // Predicated region
    $region42: #{tpu_custom_call.1} parent=1 // pred_check
      _
    $region43: #{tpu_custom_call.1} parent=1 // pred_check_branch
      %86 = sbr.rel (0) target = $region45
    $region44: #{tpu_custom_call.1} parent=1 // pred_region
      %87 = dma.done [#allocation6], 2048
    $region45: #{tpu_custom_call.1} parent=1 // pred_fallthru
      _
    // Predicated region
    $region46: #{tpu_custom_call.1} parent=1 // pred_check
      _
    $region47: #{tpu_custom_call.1} parent=1 // pred_check_branch
      %89 = sbr.rel (0) target = $region49
    $region48: #{tpu_custom_call.1} parent=1 // pred_region
      %90 = dma.done [#allocation9], 16
    $region49: #{tpu_custom_call.1} parent=1 // pred_fallthru
      _
    // Predicated region
    $region50: #{tpu_custom_call.1} parent=1 // pred_check
      _
    $region51: #{tpu_custom_call.1} parent=1 // pred_check_branch
      %92 = sbr.rel (0) target = $region53
    $region52: #{tpu_custom_call.1} parent=1 // pred_region
      %93 = dma.done [#allocation9], 4096
    $region53: #{tpu_custom_call.1} parent=1 // pred_fallthru
      _
    %v94 = vld [vmem:[#allocation2] sm:$0xf]
    %v95 = vld [vmem:[#allocation5] sm:$0xff]
    %v96 = vld [vmem:[#allocation5 + $0x8] sm:$0xff]
    %v97 = vld [vmem:[#allocation5 + $0x10] sm:$0xff]
    %v98 = vld [vmem:[#allocation5 + $0x18] sm:$0xff]
    %v99 = vld [vmem:[#allocation5 + $0x20] sm:$0xff]
    %v100 = vld [vmem:[#allocation5 + $0x28] sm:$0xff]
    %v101 = vld [vmem:[#allocation5 + $0x30] sm:$0xff]
    %v102 = vld [vmem:[#allocation5 + $0x38] sm:$0xff]
    %v103 = vld [vmem:[#allocation5 + $0x40] sm:$0xff]
    %v104 = vld [vmem:[#allocation5 + $0x48] sm:$0xff]
    %v105 = vld [vmem:[#allocation5 + $0x50] sm:$0xff]
    %v106 = vld [vmem:[#allocation5 + $0x58] sm:$0xff]
    %v107 = vld [vmem:[#allocation5 + $0x60] sm:$0xff]
    %v108 = vld [vmem:[#allocation5 + $0x68] sm:$0xff]
    %v109 = vld [vmem:[#allocation5 + $0x70] sm:$0xff]
    %v110 = vld [vmem:[#allocation5 + $0x78] sm:$0xff]
    %v111 = vld [vmem:[%s2] sm:$0x1]
    %v113 = vlaneseq
    %v114 = vshrl.u32 %v113, 7
    %v115 = vsub.s32 0, %v114
    %v116 = vrot.slane %v111, %v115
    %118 = vmatprep.subr.mxu0 0.0
    %119 = vmatpush1.msra.mxu0 %v110
    %120 = vmatprep.subr.mxu0 0.0
    %121 = vmatpush1.msra.mxu0 %v109
    %122 = vmatprep.subr.mxu0 0.0
    %123 = vmatpush1.msra.mxu0 %v108
    %124 = vmatprep.subr.mxu0 0.0
    %125 = vmatpush1.msra.mxu0 %v107
    %126 = vmatprep.subr.mxu0 0.0
    %127 = vmatpush1.msra.mxu0 %v106
    %128 = vmatprep.subr.mxu0 0.0
    %129 = vmatpush1.msra.mxu0 %v105
    %130 = vmatprep.subr.mxu0 0.0
    %131 = vmatpush1.msra.mxu0 %v104
    %132 = vmatprep.subr.mxu0 0.0
    %133 = vmatpush1.msra.mxu0 %v103
    %134 = vmatprep.subr.mxu0 0.0
    %135 = vmatpush1.msra.mxu0 %v102
    %136 = vmatprep.subr.mxu0 0.0
    %137 = vmatpush1.msra.mxu0 %v101
    %138 = vmatprep.subr.mxu0 0.0
    %139 = vmatpush1.msra.mxu0 %v100
    %140 = vmatprep.subr.mxu0 0.0
    %141 = vmatpush1.msra.mxu0 %v99
    %142 = vmatprep.subr.mxu0 0.0
    %143 = vmatpush1.msra.mxu0 %v98
    %144 = vmatprep.subr.mxu0 0.0
    %145 = vmatpush1.msra.mxu0 %v97
    %146 = vmatprep.subr.mxu0 0.0
    %147 = vmatpush1.msra.mxu0 %v96
    %148 = vmatprep.subr.mxu0 0.0
    %149 = vmatpush1.msra.mxu0 %v95
    %150 = vmatprep.subr.mxu0 0.0
    %151 = vmatpush2.msra.mxu0 0.0
    %152 = vmatprep.subr.mxu0 0.0
    %153 = vmatpush2.msra.mxu0 0.0
    %154 = vmatprep.subr.mxu0 0.0
    %155 = vmatpush2.msra.mxu0 0.0
    %156 = vmatprep.subr.mxu0 0.0
    %157 = vmatpush2.msra.mxu0 0.0
    %158 = vmatprep.subr.mxu0 0.0
    %159 = vmatpush2.msra.mxu0 0.0
    %160 = vmatprep.subr.mxu0 0.0
    %161 = vmatpush2.msra.mxu0 0.0
    %162 = vmatprep.subr.mxu0 0.0
    %163 = vmatpush2.msra.mxu0 0.0
    %164 = vmatprep.subr.mxu0 0.0
    %165 = vmatpush2.msra.mxu0 0.0
    %166 = vmatprep.subr.mxu0 0.0
    %167 = vmatpush2.msra.mxu0 0.0
    %168 = vmatprep.subr.mxu0 0.0
    %169 = vmatpush2.msra.mxu0 0.0
    %170 = vmatprep.subr.mxu0 0.0
    %171 = vmatpush2.msra.mxu0 0.0
    %172 = vmatprep.subr.mxu0 0.0
    %173 = vmatpush2.msra.mxu0 0.0
    %174 = vmatprep.subr.mxu0 0.0
    %175 = vmatpush2.msra.mxu0 0.0
    %176 = vmatprep.subr.mxu0 0.0
    %177 = vmatpush2.msra.mxu0 0.0
    %178 = vmatprep.subr.mxu0 0.0
    %179 = vmatpush2.msra.mxu0 0.0
    %180 = vmatprep.subr.mxu0 0.0
    %181 = vmatpush2.msra.mxu0 0.0
    %182 = vmatprep.mubr.f32.mxu0 0.0
    %183 = vmatmul.mubr.f32.gmra.mxu0 %v94
    %v184 = vpop.f32.mrf.mxu0
    %v185 = vadd.f32 %v116, %v184
    %v186 = vpop.f32.mrf.mxu0
    %187 = vdwg.mxu0
    %v188 = vmax.f32 %v185, 0.0
    %v189 = vld [vmem:[#allocation7] sm:$0xff]
    %v190 = vld [vmem:[#allocation7 + $0x8] sm:$0xff]
    %v191 = vld [vmem:[#allocation7 + $0x10] sm:$0xff]
    %v192 = vld [vmem:[#allocation7 + $0x18] sm:$0xff]
    %v193 = vld [vmem:[#allocation7 + $0x20] sm:$0xff]
    %v194 = vld [vmem:[#allocation7 + $0x28] sm:$0xff]
    %v195 = vld [vmem:[#allocation7 + $0x30] sm:$0xff]
    %v196 = vld [vmem:[#allocation7 + $0x38] sm:$0xff]
    %v197 = vld [vmem:[#allocation7 + $0x40] sm:$0xff]
    %v198 = vld [vmem:[#allocation7 + $0x48] sm:$0xff]
    %v199 = vld [vmem:[#allocation7 + $0x50] sm:$0xff]
    %v200 = vld [vmem:[#allocation7 + $0x58] sm:$0xff]
    %v201 = vld [vmem:[#allocation7 + $0x60] sm:$0xff]
    %v202 = vld [vmem:[#allocation7 + $0x68] sm:$0xff]
    %v203 = vld [vmem:[#allocation7 + $0x70] sm:$0xff]
    %v204 = vld [vmem:[#allocation7 + $0x78] sm:$0xff]
    %v205 = vld [vmem:[#allocation8] sm:$0x1]
    %v207 = vlaneseq
    %v208 = vshrl.u32 %v207, 7
    %v209 = vsub.s32 0, %v208
    %v210 = vrot.slane %v205, %v209
    %212 = vmatprep.subr.mxu0 0.0
    %213 = vmatpush1.msra.mxu0 %v204
    %214 = vmatprep.subr.mxu0 0.0
    %215 = vmatpush1.msra.mxu0 %v203
    %216 = vmatprep.subr.mxu0 0.0
    %217 = vmatpush1.msra.mxu0 %v202
    %218 = vmatprep.subr.mxu0 0.0
    %219 = vmatpush1.msra.mxu0 %v201
    %220 = vmatprep.subr.mxu0 0.0
    %221 = vmatpush1.msra.mxu0 %v200
    %222 = vmatprep.subr.mxu0 0.0
    %223 = vmatpush1.msra.mxu0 %v199
    %224 = vmatprep.subr.mxu0 0.0
    %225 = vmatpush1.msra.mxu0 %v198
    %226 = vmatprep.subr.mxu0 0.0
    %227 = vmatpush1.msra.mxu0 %v197
    %228 = vmatprep.subr.mxu0 0.0
    %229 = vmatpush1.msra.mxu0 %v196
    %230 = vmatprep.subr.mxu0 0.0
    %231 = vmatpush1.msra.mxu0 %v195
    %232 = vmatprep.subr.mxu0 0.0
    %233 = vmatpush1.msra.mxu0 %v194
    %234 = vmatprep.subr.mxu0 0.0
    %235 = vmatpush1.msra.mxu0 %v193
    %236 = vmatprep.subr.mxu0 0.0
    %237 = vmatpush1.msra.mxu0 %v192
    %238 = vmatprep.subr.mxu0 0.0
    %239 = vmatpush1.msra.mxu0 %v191
    %240 = vmatprep.subr.mxu0 0.0
    %241 = vmatpush1.msra.mxu0 %v190
    %242 = vmatprep.subr.mxu0 0.0
    %243 = vmatpush1.msra.mxu0 %v189
    %244 = vmatprep.subr.mxu0 0.0
    %245 = vmatpush2.msra.mxu0 0.0
    %246 = vmatprep.subr.mxu0 0.0
    %247 = vmatpush2.msra.mxu0 0.0
    %248 = vmatprep.subr.mxu0 0.0
    %249 = vmatpush2.msra.mxu0 0.0
    %250 = vmatprep.subr.mxu0 0.0
    %251 = vmatpush2.msra.mxu0 0.0
    %252 = vmatprep.subr.mxu0 0.0
    %253 = vmatpush2.msra.mxu0 0.0
    %254 = vmatprep.subr.mxu0 0.0
    %255 = vmatpush2.msra.mxu0 0.0
    %256 = vmatprep.subr.mxu0 0.0
    %257 = vmatpush2.msra.mxu0 0.0
    %258 = vmatprep.subr.mxu0 0.0
    %259 = vmatpush2.msra.mxu0 0.0
    %260 = vmatprep.subr.mxu0 0.0
    %261 = vmatpush2.msra.mxu0 0.0
    %262 = vmatprep.subr.mxu0 0.0
    %263 = vmatpush2.msra.mxu0 0.0
    %264 = vmatprep.subr.mxu0 0.0
    %265 = vmatpush2.msra.mxu0 0.0
    %266 = vmatprep.subr.mxu0 0.0
    %267 = vmatpush2.msra.mxu0 0.0
    %268 = vmatprep.subr.mxu0 0.0
    %269 = vmatpush2.msra.mxu0 0.0
    %270 = vmatprep.subr.mxu0 0.0
    %271 = vmatpush2.msra.mxu0 0.0
    %272 = vmatprep.subr.mxu0 0.0
    %273 = vmatpush2.msra.mxu0 0.0
    %274 = vmatprep.subr.mxu0 0.0
    %275 = vmatpush2.msra.mxu0 0.0
    %276 = vmatprep.mubr.f32.mxu0 0.0
    %277 = vmatmul.mubr.f32.gmra.mxu0 %v188
    %v278 = vpop.f32.mrf.mxu0
    %v279 = vadd.f32 %v210, %v278
    %v280 = vpop.f32.mrf.mxu0
    %281 = vdwg.mxu0
    %v282 = vmax.f32 %v279, 0.0
    %v283 = vld [vmem:[#allocation10] sm:$0xff]
    %v284 = vld [vmem:[#allocation10 + $0x8] sm:$0xff]
    %v285 = vld [vmem:[#allocation10 + $0x10] sm:$0xff]
    %v286 = vld [vmem:[#allocation10 + $0x18] sm:$0xff]
    %v287 = vld [vmem:[#allocation10 + $0x20] sm:$0xff]
    %v288 = vld [vmem:[#allocation10 + $0x28] sm:$0xff]
    %v289 = vld [vmem:[#allocation10 + $0x30] sm:$0xff]
    %v290 = vld [vmem:[#allocation10 + $0x38] sm:$0xff]
    %v291 = vld [vmem:[#allocation10 + $0x40] sm:$0xff]
    %v292 = vld [vmem:[#allocation10 + $0x48] sm:$0xff]
    %v293 = vld [vmem:[#allocation10 + $0x50] sm:$0xff]
    %v294 = vld [vmem:[#allocation10 + $0x58] sm:$0xff]
    %v295 = vld [vmem:[#allocation10 + $0x60] sm:$0xff]
    %v296 = vld [vmem:[#allocation10 + $0x68] sm:$0xff]
    %v297 = vld [vmem:[#allocation10 + $0x70] sm:$0xff]
    %v298 = vld [vmem:[#allocation10 + $0x78] sm:$0xff]
    %v299 = vld [vmem:[#allocation10 + $0x80] sm:$0xff]
    %v300 = vld [vmem:[#allocation10 + $0x88] sm:$0xff]
    %v301 = vld [vmem:[#allocation10 + $0x90] sm:$0xff]
    %v302 = vld [vmem:[#allocation10 + $0x98] sm:$0xff]
    %v303 = vld [vmem:[#allocation10 + $0xa0] sm:$0xff]
    %v304 = vld [vmem:[#allocation10 + $0xa8] sm:$0xff]
    %v305 = vld [vmem:[#allocation10 + $0xb0] sm:$0xff]
    %v306 = vld [vmem:[#allocation10 + $0xb8] sm:$0xff]
    %v307 = vld [vmem:[#allocation10 + $0xc0] sm:$0xff]
    %v308 = vld [vmem:[#allocation10 + $0xc8] sm:$0xff]
    %v309 = vld [vmem:[#allocation10 + $0xd0] sm:$0xff]
    %v310 = vld [vmem:[#allocation10 + $0xd8] sm:$0xff]
    %v311 = vld [vmem:[#allocation10 + $0xe0] sm:$0xff]
    %v312 = vld [vmem:[#allocation10 + $0xe8] sm:$0xff]
    %v313 = vld [vmem:[#allocation10 + $0xf0] sm:$0xff]
    %v314 = vld [vmem:[#allocation10 + $0xf8] sm:$0xff]
    %v315 = vld [vmem:[%s6] sm:$0x3]
    %v317 = vlaneseq
    %v318 = vshrl.u32 %v317, 7
    %v319 = vsub.s32 0, %v318
    %v320 = vrot.slane %v315, %v319
    %v321 = vlaneseq
    %v322 = vshrl.u32 %v321, 7
    %v323 = vsub.s32 1, %v322
    %v324 = vrot.slane %v315, %v323
    %327 = vmatprep.subr.mxu0 %v314
    %328 = vmatpush1.msra.mxu0 %v313
    %329 = vmatprep.subr.mxu0 %v312
    %330 = vmatpush1.msra.mxu0 %v311
    %331 = vmatprep.subr.mxu0 %v310
    %332 = vmatpush1.msra.mxu0 %v309
    %333 = vmatprep.subr.mxu0 %v308
    %334 = vmatpush1.msra.mxu0 %v307
    %335 = vmatprep.subr.mxu0 %v306
    %336 = vmatpush1.msra.mxu0 %v305
    %337 = vmatprep.subr.mxu0 %v304
    %338 = vmatpush1.msra.mxu0 %v303
    %339 = vmatprep.subr.mxu0 %v302
    %340 = vmatpush1.msra.mxu0 %v301
    %341 = vmatprep.subr.mxu0 %v300
    %342 = vmatpush1.msra.mxu0 %v299
    %343 = vmatprep.subr.mxu0 %v298
    %344 = vmatpush1.msra.mxu0 %v297
    %345 = vmatprep.subr.mxu0 %v296
    %346 = vmatpush1.msra.mxu0 %v295
    %347 = vmatprep.subr.mxu0 %v294
    %348 = vmatpush1.msra.mxu0 %v293
    %349 = vmatprep.subr.mxu0 %v292
    %350 = vmatpush1.msra.mxu0 %v291
    %351 = vmatprep.subr.mxu0 %v290
    %352 = vmatpush1.msra.mxu0 %v289
    %353 = vmatprep.subr.mxu0 %v288
    %354 = vmatpush1.msra.mxu0 %v287
    %355 = vmatprep.subr.mxu0 %v286
    %356 = vmatpush1.msra.mxu0 %v285
    %357 = vmatprep.subr.mxu0 %v284
    %358 = vmatpush1.msra.mxu0 %v283
    %359 = vmatprep.subr.mxu0 0.0
    %360 = vmatpush2.msra.mxu0 0.0
    %361 = vmatprep.subr.mxu0 0.0
    %362 = vmatpush2.msra.mxu0 0.0
    %363 = vmatprep.subr.mxu0 0.0
    %364 = vmatpush2.msra.mxu0 0.0
    %365 = vmatprep.subr.mxu0 0.0
    %366 = vmatpush2.msra.mxu0 0.0
    %367 = vmatprep.subr.mxu0 0.0
    %368 = vmatpush2.msra.mxu0 0.0
    %369 = vmatprep.subr.mxu0 0.0
    %370 = vmatpush2.msra.mxu0 0.0
    %371 = vmatprep.subr.mxu0 0.0
    %372 = vmatpush2.msra.mxu0 0.0
    %373 = vmatprep.subr.mxu0 0.0
    %374 = vmatpush2.msra.mxu0 0.0
    %375 = vmatprep.subr.mxu0 0.0
    %376 = vmatpush2.msra.mxu0 0.0
    %377 = vmatprep.subr.mxu0 0.0
    %378 = vmatpush2.msra.mxu0 0.0
    %379 = vmatprep.subr.mxu0 0.0
    %380 = vmatpush2.msra.mxu0 0.0
    %381 = vmatprep.subr.mxu0 0.0
    %382 = vmatpush2.msra.mxu0 0.0
    %383 = vmatprep.subr.mxu0 0.0
    %384 = vmatpush2.msra.mxu0 0.0
    %385 = vmatprep.subr.mxu0 0.0
    %386 = vmatpush2.msra.mxu0 0.0
    %387 = vmatprep.subr.mxu0 0.0
    %388 = vmatpush2.msra.mxu0 0.0
    %389 = vmatprep.subr.mxu0 0.0
    %390 = vmatpush2.msra.mxu0 0.0
    %391 = vmatprep.mubr.f32.mxu0 0.0
    %392 = vmatmul.mubr.f32.gmra.mxu0 %v282
    %v393 = vpop.f32.mrf.mxu0
    %v394 = vadd.f32 %v320, %v393
    %v395 = vpop.f32.mrf.mxu0
    %v396 = vadd.f32 %v324, %v395
    %397 = vdwg.mxu0
    %v398 = vmax.f32 %v396, -20.0
    %v399 = vmin.f32 %v398, 2.0
    %v400 = vmul.f32 %v399, 1.442695
    %v401 = vpow.pop %v400
    %v402 = vld [vmem:[%s7] sm:$0xf]
    %v403 = vmul.f32 %v401, %v402
    %v404 = vadd.f32 %v394, %v403
    %v405 = vtanh.pop %v404
    %v406 = vmul.f32 %v405, 2.0
    %v407 = vlaneseq
    %v408 = vand.u32 %v407, 127
    %vm409 = vcmp.lt.s32.totalorder %v408, 4
    %v410 = vmul.f32 %v402, -0.5
    %v411 = vmul.f32 %v410, %v402
    %v412 = vsub.f32 %v411, %v399
    %v413 = vsub.f32 %v412, 0.9189385
    %v414 = vsub.f32 0.6931472, %v404
    %v415 = vmul.f32 %v404, -2.0
    %v416 = vmax.f32 %v415, 0.0
    %v417 = vand.u32 2147483647, %v415
    %v418 = vsub.f32 0.0, %v417
    %v419 = vmul.f32 %v418, 1.442695
    %v420 = vpow.pop %v419
    %v421 = vadd.f32 %v420, 1.0
    %v422 = vlog2.pop %v421
    %v423 = vmul.f32 %v422, 0.6931472
    %v424 = vmul.f32 -0.5, %v420
    %v425 = vadd.f32 %v424, 1.0
    %v426 = vmul.f32 %v425, %v420
    %v427 = vand.u32 2147483647, %v420
    %vm428 = vcmp.lt.f32.partialorder %v427, 0.0004427343
    %v429 = vsel %vm428, %v426, %v423
    %v430 = vadd.f32 %v416, %v429
    %v431 = vsub.f32 %v414, %v430
    %v432 = vmul.f32 %v431, 2.0
    %v433 = vsub.f32 %v413, %v432
    %v434 = vsel %vm409, %v433, 0.0
    %vm435 = vcmask 1043456
    %v436 = vsel %vm435, %v434, 0.0
    %437 = vadd.xlane.f32.xlu0 %v436
    %v438 = vpop.xlane.xlu0 %437
    %vm439 = vcmp.eq.s32.totalorder %v408, 4
    %v440 = vsel %vm439, 1, 0
    %v441 = vcvt.s32.f32 %v440
    %v442 = vmul.f32 %v438, %v441
    %v443 = vadd.f32 %v406, %v442
    %444 = vst [vmem:[#allocation11] sm:$0xf] %v443
    // Predicated region
    $region54: #{tpu_custom_call.1} parent=1 // pred_check
      _
    $region55: #{tpu_custom_call.1} parent=1 // pred_check_branch
      %446 = sbr.rel (0) target = $region57
    $region56: #{tpu_custom_call.1} parent=1 // pred_region
      %s448 = ssub.s32 64, 64
      %449 = vsyncadd [#allocation4], %s448
      %s451 = sshll.u32 [#allocation11], 4
      %s452 = int_to_ptr.vmem [resolvable:$true] %s451
      %454 = dma.vmem_to_hbm [thread:$0]  %s452, 64, %s8, [#allocation4]
    $region57: #{tpu_custom_call.1} parent=1 // pred_fallthru
      _
    // Predicated region
    $region58: #{tpu_custom_call.1} parent=1 // pred_check
      _
    $region59: #{tpu_custom_call.1} parent=1 // pred_check_branch
      %456 = sbr.rel (0) target = $region61
    $region60: #{tpu_custom_call.1} parent=1 // pred_region
      %457 = dma.done [#allocation4], 64
    $region61: #{tpu_custom_call.1} parent=1 // pred_fallthru
      _
    %458 = vsyncpa [#allocation3], 1
    %459 = vsyncpa [#allocation6], 1
    %460 = vsyncpa [#allocation9], 1
    %461 = vsyncpa [#allocation4], 1

</llo_original>
